<compile_context>
chip_gen: v5e
topology: v5e:2x2
jax: 0.10.0
libtpu: 0.0.40
codegen_flags: <defaults>
</compile_context>

<pallas_src>
import jax
import jax.numpy as jnp
from jax import lax
from jax.experimental import pallas as pl
from jax.experimental.pallas import tpu as pltpu

EPS = 1e-5  # PyTorch nn.LayerNorm default


def _round_up(x, m):
    return ((x + m - 1) // m) * m


def _sublane(*dtypes):
    # rows per vreg sublane group: 8 for 32-bit, 16 for 16-bit operands.
    return 16 if any(jnp.dtype(d).itemsize == 2 for d in dtypes) else 8


def _pick_rows_tile(R, rows_tile, sublane):
    # Big tiles to amortize the ~0.35us/step overhead, but capped at ~R/2
    # (sublane-aligned) so the parallel row axis has >= 2 steps and both
    # v7x TensorCores are occupied.
    rt = min(int(rows_tile), _round_up(-(-R // 2), sublane))
    return max(rt, sublane)


def _pick_f_tile(D, F, w_itemsize, budget_bytes=16 << 20):
    # Keep the resident (D, tn) weight tile modest so it fits (double
    # buffered) inside v7x's 64 MiB VMEM even at production dims.
    if D * F * w_itemsize <= budget_bytes:
        return int(F)
    tn = (budget_bytes // (D * w_itemsize)) // 128 * 128
    return int(max(128, tn))


def _vmem_limit_bytes(rt, D, tn, x_itemsize, w_itemsize, out_itemsize):
    # Derived from the actual tile budget (double-buffered x/out tiles +
    # weight / LN params / bias blocks) with 25% margin + headroom for
    # compiler scratch.  No fixed floor, capped safely below v7x's 64 MiB.
    db = 2 * rt * (D * x_itemsize + tn * out_itemsize)
    consts = 2 * (D * tn * w_itemsize + (2 * D + tn) * 4)
    est = int(1.25 * (db + consts)) + (4 << 20)
    return int(min(est, 56 << 20))


# ---------------- Fused PreNorm(dim, Linear(dim, F)) kernel ----------------
def _prenorm_linear_kernel(x_ref, g_ref, b_ref, w_ref, bias_ref, o_ref):
    # x_ref: (rt, D) row tile of the flattened (R, D) input; w_ref: (D, tn).
    x = x_ref[...].astype(jnp.float32)
    mean = jnp.mean(x, axis=-1, keepdims=True)
    xc = x - mean
    var = jnp.mean(xc * xc, axis=-1, keepdims=True)
    normed = xc * lax.rsqrt(var + EPS) * g_ref[...] + b_ref[...]
    lhs = normed.astype(w_ref.dtype)  # bf16 on the MXU when requested
    acc = jnp.dot(lhs, w_ref[...], preferred_element_type=jnp.float32)
    o_ref[...] = (acc + bias_ref[...]).astype(o_ref.dtype)


def prenorm_linear(x, gamma, beta, w, b, *, rows_tile=1024, mxu_dtype=None):
    """Fused fn(LayerNorm(x)) with fn = Linear(D, F).  x: (B, N, D)."""
    B, N, D = x.shape
    Dw, F = w.shape
    assert Dw == D

    R = B * N
    x2d = x.reshape(R, D)  # free reshape; no padding, no extra HBM copies

    mxu_dtype = jnp.dtype(mxu_dtype) if mxu_dtype is not None else jnp.dtype(x.dtype)
    sublane = _sublane(x.dtype, mxu_dtype)
    rt = _pick_rows_tile(R, rows_tile, sublane)
    tn = _pick_f_tile(D, F, mxu_dtype.itemsize)

    w_c = w.astype(mxu_dtype)
    gamma2 = gamma.reshape(1, D).astype(jnp.float32)
    beta2 = beta.reshape(1, D).astype(jnp.float32)
    bias2 = b.reshape(1, F).astype(jnp.float32)

    grid = (pl.cdiv(R, rt), pl.cdiv(F, tn))
    vmem_limit = _vmem_limit_bytes(
        rt, D, tn,
        jnp.dtype(x.dtype).itemsize, mxu_dtype.itemsize,
        jnp.dtype(x.dtype).itemsize)

    out2d = pl.pallas_call(
        _prenorm_linear_kernel,
        out_shape=jax.ShapeDtypeStruct((R, F), x.dtype),
        grid_spec=pltpu.PrefetchScalarGridSpec(
            num_scalar_prefetch=0,
            grid=grid,
            in_specs=[
                pl.BlockSpec((rt, D), lambda i, j: (i, 0)),   # x row tile
                pl.BlockSpec((1, D), lambda i, j: (0, 0)),    # gamma (resident)
                pl.BlockSpec((1, D), lambda i, j: (0, 0)),    # beta  (resident)
                pl.BlockSpec((D, tn), lambda i, j: (0, j)),   # W column tile
                pl.BlockSpec((1, tn), lambda i, j: (0, j)),   # bias column tile
            ],
            out_specs=pl.BlockSpec((rt, tn), lambda i, j: (i, j)),
        ),
        compiler_params=pltpu.CompilerParams(
            dimension_semantics=("parallel", "parallel"),
            vmem_limit_bytes=vmem_limit,
        ),
    )(x2d, gamma2, beta2, w_c, bias2)

    return out2d.reshape(B, N, F)


# --------------- Generic path: Pallas LayerNorm + arbitrary fn ---------------
def _layernorm_kernel(x_ref, g_ref, b_ref, o_ref):
    x = x_ref[...].astype(jnp.float32)
    mean = jnp.mean(x, axis=-1, keepdims=True)
    xc = x - mean
    var = jnp.mean(xc * xc, axis=-1, keepdims=True)
    y = xc * lax.rsqrt(var + EPS) * g_ref[...] + b_ref[...]
    o_ref[...] = y.astype(o_ref.dtype)


def layernorm(x, gamma, beta, *, rows_tile=1024):
    """LayerNorm over the last dim of (B, N, D) via Pallas (no padding copies)."""
    B, N, D = x.shape
    R = B * N
    x2d = x.reshape(R, D)

    sublane = _sublane(x.dtype)
    rt = _pick_rows_tile(R, rows_tile, sublane)

    gamma2 = gamma.reshape(1, D).astype(jnp.float32)
    beta2 = beta.reshape(1, D).astype(jnp.float32)

    vmem_limit = _vmem_limit_bytes(
        rt, D, D, jnp.dtype(x.dtype).itemsize, 0, jnp.dtype(x.dtype).itemsize)

    out2d = pl.pallas_call(
        _layernorm_kernel,
        out_shape=jax.ShapeDtypeStruct((R, D), x.dtype),
        grid_spec=pltpu.PrefetchScalarGridSpec(
            num_scalar_prefetch=0,
            grid=(pl.cdiv(R, rt),),
            in_specs=[
                pl.BlockSpec((rt, D), lambda i: (i, 0)),
                pl.BlockSpec((1, D), lambda i: (0, 0)),
                pl.BlockSpec((1, D), lambda i: (0, 0)),
            ],
            out_specs=pl.BlockSpec((rt, D), lambda i: (i, 0)),
        ),
        compiler_params=pltpu.CompilerParams(
            dimension_semantics=("parallel",),
            vmem_limit_bytes=vmem_limit,
        ),
    )(x2d, gamma2, beta2)

    return out2d.reshape(B, N, D)


def pre_norm(x, gamma, beta, fn, *, rows_tile=1024, **kwargs):
    """PreNorm.forward for an arbitrary JAX callable fn: fn(LayerNorm(x)).

    If fn begins with a Linear(D, F) projection (attention q/k/v, FFN fc1),
    prefer `prenorm_linear` so the normalized tensor never round-trips HBM.
    """
    return fn(layernorm(x, gamma, beta, rows_tile=rows_tile), **kwargs)


# ---------------------------- pure-JAX reference -----------------------------
def _ref_pre_norm(x, gamma, beta, w, b):
    mean = jnp.mean(x, axis=-1, keepdims=True)
    var = jnp.mean((x - mean) ** 2, axis=-1, keepdims=True)
    normed = (x - mean) / jnp.sqrt(var + EPS) * gamma + beta
    return normed @ w + b


if __name__ == "__main__":
    key = jax.random.PRNGKey(0)
    # Small demo shapes; D = F = 128 keeps every tile lane-dense, N = 100
    # makes B*N = 200 ragged to exercise the cdiv-grid partial-tile path
    # (rt = 104 -> 2 parallel row steps, no wrapper-side pad/slice copies).
    B, N, D = 2, 100, 128
    F = D

    kx, kw, kb = jax.random.split(key, 3)
    x = jax.random.normal(kx, (B, N, D), dtype=jnp.float32)

    # LayerNorm params: PyTorch default init (gamma=1, beta=0).
    gamma = jnp.ones((D,), dtype=jnp.float32)
    beta = jnp.zeros((D,), dtype=jnp.float32)

    # fn = Linear(D, F), deterministically initialized in-script.
    w = jax.random.normal(kw, (D, F), dtype=jnp.float32) * 0.02
    b = jax.random.normal(kb, (F,), dtype=jnp.float32) * 0.01

    ref = _ref_pre_norm(x, gamma, beta, w, b)

    # Fused LayerNorm + Linear, f32 MXU operands (tight tolerance).
    out = prenorm_linear(x, gamma, beta, w, b)
    jax.block_until_ready(out)
    assert out.shape == (B, N, F)
    assert jnp.allclose(out, ref, atol=1e-4, rtol=1e-4)

    # Fused path with bf16 MXU operands (v6e/v7x-friendly); looser tolerance.
    out_bf16 = prenorm_linear(x, gamma, beta, w, b, mxu_dtype=jnp.bfloat16)
    jax.block_until_ready(out_bf16)
    assert jnp.allclose(out_bf16, ref, atol=5e-2, rtol=5e-2)

    # Generic PreNorm path (Pallas LayerNorm + arbitrary JAX fn).
    out2 = pre_norm(x, gamma, beta, lambda z: z @ w + b)
    jax.block_until_ready(out2)
    assert jnp.allclose(out2, ref, atol=1e-4, rtol=1e-4)

    print("KERNEL_OK")
</pallas_src>

<mosaic_0001>
module attributes {stable_mosaic.version = 11 : i64} {
  func.func @_prenorm_linear_kernel(%arg0: i32, %arg1: i32, %arg2: memref<104x128xf32, #tpu.memory_space<vmem>>, %arg3: memref<1x128xf32, #tpu.memory_space<vmem>>, %arg4: memref<1x128xf32, #tpu.memory_space<vmem>>, %arg5: memref<128x128xf32, #tpu.memory_space<vmem>>, %arg6: memref<1x128xf32, #tpu.memory_space<vmem>>, %arg7: memref<104x128xf32, #tpu.memory_space<vmem>>) attributes {dimension_semantics = [#tpu.dimension_semantics<parallel>, #tpu.dimension_semantics<parallel>], iteration_bounds = array<i64: 2, 1>, scalar_prefetch = 0 : i64, scratch_operands = 0 : i64, tpu.core_type = #tpu.core_type<tc>, window_params = [{transform_indices = @transform_0, window_bounds = array<i64: 104, 128>}, {pipeline_mode = #tpu.pipeline_mode<synchronous>, transform_indices = @transform_1, window_bounds = array<i64: 1, 128>}, {pipeline_mode = #tpu.pipeline_mode<synchronous>, transform_indices = @transform_2, window_bounds = array<i64: 1, 128>}, {transform_indices = @transform_3, window_bounds = array<i64: 128, 128>}, {transform_indices = @transform_4, window_bounds = array<i64: 1, 128>}, {transform_indices = @transform_5, window_bounds = array<i64: 104, 128>}]} {
    %c0 = arith.constant 0 : index
    %c0_0 = arith.constant 0 : index
    %0 = vector.load %arg2[%c0, %c0_0] : memref<104x128xf32, #tpu.memory_space<vmem>>, vector<104x128xf32>
    %cst = arith.constant dense<0.000000e+00> : vector<104xf32>
    %1 = vector.multi_reduction <add>, %0, %cst [1] : vector<104x128xf32> to vector<104xf32>
    %2 = vector.shape_cast %1 : vector<104xf32> to vector<104x1xf32>
    %cst_1 = arith.constant 1.280000e+02 : f32
    %3 = vector.broadcast %cst_1 : f32 to vector<104x1xf32>
    %4 = arith.divf %2, %3 : vector<104x1xf32>
    %5 = vector.broadcast %4 : vector<104x1xf32> to vector<104x128xf32>
    %6 = arith.subf %0, %5 : vector<104x128xf32>
    %7 = arith.mulf %6, %6 : vector<104x128xf32>
    %cst_2 = arith.constant dense<0.000000e+00> : vector<104xf32>
    %8 = vector.multi_reduction <add>, %7, %cst_2 [1] : vector<104x128xf32> to vector<104xf32>
    %9 = vector.shape_cast %8 : vector<104xf32> to vector<104x1xf32>
    %cst_3 = arith.constant 1.280000e+02 : f32
    %10 = vector.broadcast %cst_3 : f32 to vector<104x1xf32>
    %11 = arith.divf %9, %10 : vector<104x1xf32>
    %cst_4 = arith.constant 9.99999974E-6 : f32
    %12 = vector.broadcast %cst_4 : f32 to vector<104x1xf32>
    %13 = arith.addf %11, %12 : vector<104x1xf32>
    %14 = math.rsqrt %13 : vector<104x1xf32>
    %15 = vector.broadcast %14 : vector<104x1xf32> to vector<104x128xf32>
    %16 = arith.mulf %6, %15 : vector<104x128xf32>
    %c0_5 = arith.constant 0 : index
    %c0_6 = arith.constant 0 : index
    %17 = vector.load %arg3[%c0_5, %c0_6] : memref<1x128xf32, #tpu.memory_space<vmem>>, vector<1x128xf32>
    %18 = vector.broadcast %17 : vector<1x128xf32> to vector<104x128xf32>
    %19 = arith.mulf %16, %18 : vector<104x128xf32>
    %c0_7 = arith.constant 0 : index
    %c0_8 = arith.constant 0 : index
    %20 = vector.load %arg4[%c0_7, %c0_8] : memref<1x128xf32, #tpu.memory_space<vmem>>, vector<1x128xf32>
    %21 = vector.broadcast %20 : vector<1x128xf32> to vector<104x128xf32>
    %22 = arith.addf %19, %21 : vector<104x128xf32>
    %c0_9 = arith.constant 0 : index
    %c0_10 = arith.constant 0 : index
    %23 = vector.load %arg5[%c0_9, %c0_10] : memref<128x128xf32, #tpu.memory_space<vmem>>, vector<128x128xf32>
    %cst_11 = arith.constant dense<0.000000e+00> : vector<104x128xf32>
    %24 = tpu.matmul %22, %23, %cst_11 {dimension_numbers = #tpu.dot_dimension_numbers<[1], [0], [0], [1], [0, 0, 1, 1], [], []>} : vector<104x128xf32>, vector<128x128xf32>, vector<104x128xf32> -> vector<104x128xf32>
    %c0_12 = arith.constant 0 : index
    %c0_13 = arith.constant 0 : index
    %25 = vector.load %arg6[%c0_12, %c0_13] : memref<1x128xf32, #tpu.memory_space<vmem>>, vector<1x128xf32>
    %26 = vector.broadcast %25 : vector<1x128xf32> to vector<104x128xf32>
    %27 = arith.addf %24, %26 : vector<104x128xf32>
    %c0_14 = arith.constant 0 : index
    %c0_15 = arith.constant 0 : index
    %28 = vector.load %arg7[%c0_14, %c0_15] : memref<104x128xf32, #tpu.memory_space<vmem>>, vector<104x128xf32>
    tpu.vector_store %arg7[%c0_14, %c0_15], %27 {strides = array<i32>} : memref<104x128xf32, #tpu.memory_space<vmem>>, vector<104x128xf32>,
    return
  }
  func.func @transform_0(%arg0: i32, %arg1: i32) -> (i32, i32) {
    %c0_i32 = arith.constant 0 : i32
    %c0_i32_0 = arith.constant 0 : i32
    return %arg0, %c0_i32 : i32, i32
  }
  func.func @transform_1(%arg0: i32, %arg1: i32) -> (i32, i32) {
    %c0_i32 = arith.constant 0 : i32
    %c0_i32_0 = arith.constant 0 : i32
    %c0_i32_1 = arith.constant 0 : i32
    return %c0_i32, %c0_i32_0 : i32, i32
  }
  func.func @transform_2(%arg0: i32, %arg1: i32) -> (i32, i32) {
    %c0_i32 = arith.constant 0 : i32
    %c0_i32_0 = arith.constant 0 : i32
    %c0_i32_1 = arith.constant 0 : i32
    return %c0_i32, %c0_i32_0 : i32, i32
  }
  func.func @transform_3(%arg0: i32, %arg1: i32) -> (i32, i32) {
    %c0_i32 = arith.constant 0 : i32
    %c0_i32_0 = arith.constant 0 : i32
    return %c0_i32, %arg1 : i32, i32
  }
  func.func @transform_4(%arg0: i32, %arg1: i32) -> (i32, i32) {
    %c0_i32 = arith.constant 0 : i32
    %c0_i32_0 = arith.constant 0 : i32
    return %c0_i32, %arg1 : i32, i32
  }
  func.func @transform_5(%arg0: i32, %arg1: i32) -> (i32, i32) {
    %c0_i32 = arith.constant 0 : i32
    return %arg0, %arg1 : i32, i32
  }
}

</mosaic_0001>

<llo_original>
// kernel: tpu_custom_call.1
$region0: #{tpu_custom_call.1}
  #allocation0 [shape = 'u32[]', space=smem, size = 0x4, offset = 0x4, fixed_abs, tag = 'smem constant byte address 0x4 - core index']
  #allocation1 [shape = 'u32[72,128]{1,0:T(1,128)}', space=vmem, size = 0x9000, scoped, tag = 'internal scratch']
  %s0 = inlined_call_operand.hbm [shape: f32[200,128], index: 0, kind: input, shape index: {}]
  %s1 = inlined_call_operand.hbm [shape: f32[1,128], index: 1, kind: input, shape index: {}]
  %s2 = inlined_call_operand.vmem [shape: f32[1,128], index: 2, kind: input, shape index: {}]
  %s3 = inlined_call_operand.hbm [shape: f32[128,128], index: 3, kind: input, shape index: {}]
  %s4 = inlined_call_operand.vmem [shape: f32[1,128], index: 4, kind: input, shape index: {}]
  %s5 = inlined_call_operand.hbm [shape: f32[200,128], index: 5, kind: output, shape index: {}]
  %s6 = sld [smem:[#allocation0]]
  $region65: #{tpu_custom_call.1} parent=0
    _
  %s8 = ssub.s32 1, %s6
  %s9 = scalar_select 0, %s8, %s6
  $region1: #{tpu_custom_call.1} parent=0
    #allocation2 [shape = 'u8[106496]{0}', space=vmem, size = 0x1a000, scoped, tag = 'input window, operand 0']
    #allocation3 [shape = 's32[2]{0}', space=sflag, size = 0x8, scoped, tag = 'scoped memory for tpu_custom_call.1']
    #allocation4 [shape = 's32[2]{0}', space=sflag, size = 0x8, scoped, tag = 'scoped memory for tpu_custom_call.1']
    #allocation5 [shape = 'u8[512]{0}', space=vmem, size = 0x400, scoped, tag = 'input window, operand 1, single buffered']
    #allocation6 [shape = 's32[1]{0}', space=sflag, size = 0x4, scoped, tag = 'scoped memory for tpu_custom_call.1']
    #allocation7 [shape = 'u8[65536]{0}', space=vmem, size = 0x10000, scoped, tag = 'input window, operand 3, single buffered']
    #allocation8 [shape = 'u8[106496]{0}', space=vmem, size = 0x1a000, scoped, tag = 'output window, operand 0']
    %10 = vsyncpa [#allocation3], 0
    %s11 = scalar_lea.sflag [#allocation3], 1
    %12 = vsyncpa %s11, 0
    %13 = vsyncpa [#allocation6], 0
    %14 = vsyncpa [#allocation4], 0
    %s15 = scalar_lea.sflag [#allocation4], 1
    %16 = vsyncpa %s15, 0
    loop: start=0, step=1, limit=4
    $region2: #{tpu_custom_call.1} parent=1 // loop_pre_header
      _
    $region3: #{tpu_custom_call.1} parent=1 // loop_header
      %s18 = sphi 0, %s22
      %p19 = scmp.ge.s32.totalorder %s18, 4
      %s25 = sphi 0, %s37
      %s26 = sphi 0, %s33
      %s27 = sphi 0, %s25
      %s28 = sphi 0, %s26
      %s29 = sphi 0, %s27
      %s30 = sphi 0, %s28
      %s40 = sphi 0, %s42
      %s43 = sphi 0, %s40
      %s44 = sphi 0, %s43
      %s60 = sphi 0, %s44
      %s64 = sphi 0, %s64
      %s66 = sphi 0, %s64
      %s67 = sphi 0, %s66
      %s81 = sphi 0, %s67
      %s85 = sphi 0, %s85
      %s87 = sphi 0, %s85
      %s88 = sphi 0, %s87
      %s102 = sphi 0, %s88
      %s108 = sphi 0, %s110
      %s111 = sphi 0, %s108
      %s112 = sphi 0, %s111
      %s128 = sphi 0, %s112
      %s134 = sphi 0, %s136
      %s137 = sphi 0, %s134
      %s138 = sphi 0, %s137
      %s154 = sphi 0, %s138
      %s162 = sphi 0, %s164
      %s165 = sphi 0, %s162
      %s166 = sphi 0, %s165
      %s182 = sphi 0, %s166
    $region4: #{tpu_custom_call.1} parent=1 // loop_header_branch
      %21 = sbr.rel (%p19) target = $region8
    $region5: #{tpu_custom_call.1} parent=1 // loop_body
      %s23 = ssub.s32 %s18, 1
      %s24 = ssub.s32 %s18, 2
      %s31 = sadd.s32 1, %s26
      %p32 = scmp.ge.s32.totalorder %s31, 1
      %s33 = scalar_select %p32, 0, %s31
      %s34 = sadd.s32 1, %s25
      %s35 = scalar_select %p32, %s34, %s25
      %p36 = scmp.ge.s32.totalorder %s35, 2
      %s37 = scalar_select %p36, 0, %s35
      %s38 = ssub.s32 %s25, %s37
      %p39 = scmp.eq.s32.totalorder %s38, 0
      %s41 = sadd.s32 %s40, 1
      %s42 = scalar_select %p39, %s40, %s41
      %p45 = pneg %p39
      %p46 = scmp.eq.s32.totalorder %s18, 1
      %p47 = por %p45, %p46
      %p48 = scmp.ne.s32.totalorder %s40, %s43
      %p49 = scmp.eq.s32.totalorder %s18, 0
      %p50 = por %p48, %p49
      %p51 = scmp.ne.s32.totalorder %s40, %s43
      %p52 = scmp.eq.s32.totalorder %s23, 1
      %p53 = por %p51, %p52
      %p54 = scmp.ne.s32.totalorder %s43, %s44
      %p55 = scmp.eq.s32.totalorder %s23, 0
      %p56 = por %p54, %p55
      %p57 = scmp.ne.s32.totalorder %s43, %s44
      %p58 = scmp.eq.s32.totalorder %s24, 1
      %p59 = por %p57, %p58
      %p61 = scmp.ne.s32.totalorder %s44, %s60
      %p62 = scmp.eq.s32.totalorder %s24, 0
      %p63 = por %p61, %p62
      %s65 = sadd.s32 %s64, 1
      %p68 = scmp.eq.s32.totalorder %s18, 1
      %p69 = scmp.ne.s32.totalorder %s64, %s66
      %p70 = scmp.eq.s32.totalorder %s18, 0
      %p71 = por %p69, %p70
      %p72 = scmp.ne.s32.totalorder %s64, %s66
      %p73 = scmp.eq.s32.totalorder %s23, 1
      %p74 = por %p72, %p73
      %p75 = scmp.ne.s32.totalorder %s66, %s67
      %p76 = scmp.eq.s32.totalorder %s23, 0
      %p77 = por %p75, %p76
      %p78 = scmp.ne.s32.totalorder %s66, %s67
      %p79 = scmp.eq.s32.totalorder %s24, 1
      %p80 = por %p78, %p79
      %p82 = scmp.ne.s32.totalorder %s67, %s81
      %p83 = scmp.eq.s32.totalorder %s24, 0
      %p84 = por %p82, %p83
      %s86 = sadd.s32 %s85, 1
      %p89 = scmp.eq.s32.totalorder %s18, 1
      %p90 = scmp.ne.s32.totalorder %s85, %s87
      %p91 = scmp.eq.s32.totalorder %s18, 0
      %p92 = por %p90, %p91
      %p93 = scmp.ne.s32.totalorder %s85, %s87
      %p94 = scmp.eq.s32.totalorder %s23, 1
      %p95 = por %p93, %p94
      %p96 = scmp.ne.s32.totalorder %s87, %s88
      %p97 = scmp.eq.s32.totalorder %s23, 0
      %p98 = por %p96, %p97
      %p99 = scmp.ne.s32.totalorder %s87, %s88
      %p100 = scmp.eq.s32.totalorder %s24, 1
      %p101 = por %p99, %p100
      %p103 = scmp.ne.s32.totalorder %s88, %s102
      %p104 = scmp.eq.s32.totalorder %s24, 0
      %p105 = por %p103, %p104
      %s106 = ssub.s32 %s26, %s33
      %p107 = scmp.eq.s32.totalorder %s106, 0
      %s109 = sadd.s32 %s108, 1
      %s110 = scalar_select %p107, %s108, %s109
      %p113 = pneg %p107
      %p114 = scmp.eq.s32.totalorder %s18, 1
      %p115 = por %p113, %p114
      %p116 = scmp.ne.s32.totalorder %s108, %s111
      %p117 = scmp.eq.s32.totalorder %s18, 0
      %p118 = por %p116, %p117
      %p119 = scmp.ne.s32.totalorder %s108, %s111
      %p120 = scmp.eq.s32.totalorder %s23, 1
      %p121 = por %p119, %p120
      %p122 = scmp.ne.s32.totalorder %s111, %s112
      %p123 = scmp.eq.s32.totalorder %s23, 0
      %p124 = por %p122, %p123
      %p125 = scmp.ne.s32.totalorder %s111, %s112
      %p126 = scmp.eq.s32.totalorder %s24, 1
      %p127 = por %p125, %p126
      %p129 = scmp.ne.s32.totalorder %s112, %s128
      %p130 = scmp.eq.s32.totalorder %s24, 0
      %p131 = por %p129, %p130
      %s132 = ssub.s32 %s26, %s33
      %p133 = scmp.eq.s32.totalorder %s132, 0
      %s135 = sadd.s32 %s134, 1
      %s136 = scalar_select %p133, %s134, %s135
      %p139 = pneg %p133
      %p140 = scmp.eq.s32.totalorder %s18, 1
      %p141 = por %p139, %p140
      %p142 = scmp.ne.s32.totalorder %s134, %s137
      %p143 = scmp.eq.s32.totalorder %s18, 0
      %p144 = por %p142, %p143
      %p145 = scmp.ne.s32.totalorder %s134, %s137
      %p146 = scmp.eq.s32.totalorder %s23, 1
      %p147 = por %p145, %p146
      %p148 = scmp.ne.s32.totalorder %s137, %s138
      %p149 = scmp.eq.s32.totalorder %s23, 0
      %p150 = por %p148, %p149
      %p151 = scmp.ne.s32.totalorder %s137, %s138
      %p152 = scmp.eq.s32.totalorder %s24, 1
      %p153 = por %p151, %p152
      %p155 = scmp.ne.s32.totalorder %s138, %s154
      %p156 = scmp.eq.s32.totalorder %s24, 0
      %p157 = por %p155, %p156
      %s158 = ssub.s32 %s25, %s37
      %s159 = ssub.s32 %s26, %s33
      %s160 = sor.u32 %s158, %s159
      %p161 = scmp.eq.s32.totalorder %s160, 0
      %s163 = sadd.s32 %s162, 1
      %s164 = scalar_select %p161, %s162, %s163
      %p167 = pneg %p161
      %p168 = scmp.eq.s32.totalorder %s18, 1
      %p169 = por %p167, %p168
      %p170 = scmp.ne.s32.totalorder %s162, %s165
      %p171 = scmp.eq.s32.totalorder %s18, 0
      %p172 = por %p170, %p171
      %p173 = scmp.ne.s32.totalorder %s162, %s165
      %p174 = scmp.eq.s32.totalorder %s23, 1
      %p175 = por %p173, %p174
      %p176 = scmp.ne.s32.totalorder %s165, %s166
      %p177 = scmp.eq.s32.totalorder %s23, 0
      %p178 = por %p176, %p177
      %p179 = scmp.ne.s32.totalorder %s165, %s166
      %p180 = scmp.eq.s32.totalorder %s24, 1
      %p181 = por %p179, %p180
      %p183 = scmp.ne.s32.totalorder %s166, %s182
      %p184 = scmp.eq.s32.totalorder %s24, 0
      %p185 = por %p183, %p184
      %p186 = scmp.le.s32.totalorder 1, %s18
      %p187 = scmp.lt.s32.totalorder %s18, 3
      %p188 = pnand %p186, %p187
      %p189 = pneg %p188
      // Predicated region
      $region9: #{tpu_custom_call.1} parent=5 // pred_check
        _
      $region10: #{tpu_custom_call.1} parent=5 // pred_check_branch
        %191 = sbr.rel (%p188) target = $region12
      $region11: #{tpu_custom_call.1} parent=5 // pred_region
        %s192 = ssub.s32 %s18, 1
        // Predicated region
        $region13: #{tpu_custom_call.1} parent=11 // pred_check
          %p193 = pneg %p77
        $region14: #{tpu_custom_call.1} parent=11 // pred_check_branch
          %195 = sbr.rel (%p193) target = $region16
        $region15: #{tpu_custom_call.1} parent=11 // pred_region
          %197 = vsyncadd [#allocation6], 0
          %s199 = sshll.u32 %s1, 4
          %s200 = int_to_ptr.hbm [resolvable:$true] %s199
          %s201 = sshll.u32 [#allocation5], 4
          %s202 = int_to_ptr.vmem [resolvable:$true] %s201
          %204 = dma.hbm_to_vmem [thread:$0]  %s200, 16, %s202, [#allocation6]
        $region16: #{tpu_custom_call.1} parent=11 // pred_fallthru
          _
        // Predicated region
        $region17: #{tpu_custom_call.1} parent=11 // pred_check
          %p205 = pneg %p98
        $region18: #{tpu_custom_call.1} parent=11 // pred_check_branch
          %207 = sbr.rel (%p205) target = $region20
        $region19: #{tpu_custom_call.1} parent=11 // pred_region
          _
        $region20: #{tpu_custom_call.1} parent=11 // pred_fallthru
          _
        // Predicated region
        $region21: #{tpu_custom_call.1} parent=11 // pred_check
          %p208 = pneg %p124
        $region22: #{tpu_custom_call.1} parent=11 // pred_check_branch
          %210 = sbr.rel (%p208) target = $region24
        $region23: #{tpu_custom_call.1} parent=11 // pred_region
          %212 = vsyncadd [#allocation6], 0
          %s213 = smul.addr %s28, 8
          %s214 = scalar_lea.hbm %s3, %s213
          %s215 = sshll.u32 %s214, 4
          %s216 = int_to_ptr.hbm [resolvable:$true] %s215
          %s217 = sshll.u32 [#allocation7], 4
          %s218 = int_to_ptr.vmem [resolvable:$true] %s217
          %223 = dma.hbm_to_vmem [thread:$0]  %s216, 2048, %s218, [#allocation6], 128, 128, 8
        $region24: #{tpu_custom_call.1} parent=11 // pred_fallthru
          _
        // Predicated region
        $region25: #{tpu_custom_call.1} parent=11 // pred_check
          %p224 = pneg %p150
        $region26: #{tpu_custom_call.1} parent=11 // pred_check_branch
          %226 = sbr.rel (%p224) target = $region28
        $region27: #{tpu_custom_call.1} parent=11 // pred_region
          %p227 = scmp.lt.s32.totalorder %s28, 0
          %s228 = scalar_select %p227, %s28, 0
          %s229 = scalar_lea.vmem %s4, %s228
        $region28: #{tpu_custom_call.1} parent=11 // pred_fallthru
          _
      $region12: #{tpu_custom_call.1} parent=5 // pred_fallthru
        _
      %p230 = scmp.lt.s32.totalorder %s18, 2
      // Predicated region
      $region29: #{tpu_custom_call.1} parent=5 // pred_check
        %p231 = pneg %p230
      $region30: #{tpu_custom_call.1} parent=5 // pred_check_branch
        %233 = sbr.rel (%p231) target = $region32
      $region31: #{tpu_custom_call.1} parent=5 // pred_region
        // Predicated region
        $region33: #{tpu_custom_call.1} parent=31 // pred_check
          %p234 = pneg %p50
        $region34: #{tpu_custom_call.1} parent=31 // pred_check_branch
          %236 = sbr.rel (%p234) target = $region36
        $region35: #{tpu_custom_call.1} parent=31 // pred_region
          %s237 = sand.u32 %s40, 1
          %s238 = scalar_lea.sflag [#allocation3], %s237
          %s239 = sand.u32 %s40, 1
          %s240 = smul.addr %s239, 104
          %s241 = scalar_lea.vmem [#allocation2], %s240
          %s242 = smul.u32 13, %s25
          %s243 = ssub.s32 25, %s242
          %p244 = scmp.lt.s32.totalorder %s243, 13
          %s245 = scalar_select %p244, %s243, 13
          %s246 = smul.u32 8, %s245
          %s247 = ssub.s32 104, %s246
          %s248 = sshll.u32 %s247, 4
          %249 = vsyncadd %s238, %s248
          %p250 = scmp.ne.s32.totalorder 0, %s246
          %s251 = smul.addr %s242, 8
          %s252 = scalar_lea.hbm %s0, %s251
          %s253 = smul.u32 8, %s245
          %s254 = sshll.u32 %s252, 4
          %s255 = int_to_ptr.hbm [resolvable:$true] %s254
          %s256 = sshll.u32 %s241, 4
          %s257 = int_to_ptr.vmem [resolvable:$true] %s256
          %s258 = sshll.u32 %s253, 4
          %262 = dma.hbm_to_vmem [thread:$0]  (%p250), %s255, %s258, %s257, %s238, 128, 128, 8
        $region36: #{tpu_custom_call.1} parent=31 // pred_fallthru
          _
      $region32: #{tpu_custom_call.1} parent=5 // pred_fallthru
        _
      %p263 = scmp.le.s32.totalorder 1, %s18
      %p264 = scmp.lt.s32.totalorder %s18, 3
      %p265 = pnand %p263, %p264
      %p266 = pneg %p265
      // Predicated region
      $region37: #{tpu_custom_call.1} parent=5 // pred_check
        _
      $region38: #{tpu_custom_call.1} parent=5 // pred_check_branch
        %268 = sbr.rel (%p265) target = $region40
      $region39: #{tpu_custom_call.1} parent=5 // pred_region
        %s269 = ssub.s32 %s18, 1
        %s270 = sand.u32 %s43, 1
        %s271 = scalar_lea.sflag [#allocation3], %s270
        %s272 = sand.u32 %s43, 1
        %s273 = smul.addr %s272, 104
        %s274 = scalar_lea.vmem [#allocation2], %s273
        // Predicated region
        $region41: #{tpu_custom_call.1} parent=39 // pred_check
          %p275 = pneg %p56
        $region42: #{tpu_custom_call.1} parent=39 // pred_check_branch
          %277 = sbr.rel (%p275) target = $region44
        $region43: #{tpu_custom_call.1} parent=39 // pred_region
          %279 = dma.done %s271, 1664
        $region44: #{tpu_custom_call.1} parent=39 // pred_fallthru
          _
        // Predicated region
        $region45: #{tpu_custom_call.1} parent=39 // pred_check
          %p280 = pneg %p77
        $region46: #{tpu_custom_call.1} parent=39 // pred_check_branch
          %282 = sbr.rel (%p280) target = $region48
        $region47: #{tpu_custom_call.1} parent=39 // pred_region
          %284 = dma.done [#allocation6], 16
        $region48: #{tpu_custom_call.1} parent=39 // pred_fallthru
          _
        // Predicated region
        $region49: #{tpu_custom_call.1} parent=39 // pred_check
          %p285 = pneg %p124
        $region50: #{tpu_custom_call.1} parent=39 // pred_check_branch
          %287 = sbr.rel (%p285) target = $region52
        $region51: #{tpu_custom_call.1} parent=39 // pred_region
          %289 = dma.done [#allocation6], 2048
        $region52: #{tpu_custom_call.1} parent=39 // pred_fallthru
          _
        %s290 = sand.u32 %s43, 1
        %s291 = scalar_lea.sflag [#allocation3], %s290
        %s292 = sand.u32 %s43, 1
        %s293 = smul.addr %s292, 104
        %s294 = scalar_lea.vmem [#allocation2], %s293
        %p295 = pneg %p56
        %p296 = pneg %p53
        %p297 = pneg %p77
        %p298 = pneg %p74
        %p299 = pneg %p98
        %p300 = pneg %p95
        %p301 = pneg %p124
        %p302 = pneg %p121
        %p303 = scmp.lt.s32.totalorder %s28, 0
        %s304 = scalar_select %p303, %s28, 0
        %s305 = scalar_lea.vmem %s4, %s304
        %p306 = pneg %p150
        %p307 = pneg %p147
        %p308 = pneg %p178
        %p309 = pneg %p175
        %s310 = sand.u32 %s165, 1
        %s311 = scalar_lea.sflag [#allocation4], %s310
        %s312 = sand.u32 %s165, 1
        %s313 = smul.addr %s312, 104
        %s314 = scalar_lea.vmem [#allocation8], %s313
        %s315 = smul.u32 13, %s27
        %s316 = ssub.s32 25, %s315
        %p317 = scmp.lt.s32.totalorder %s316, 13
        %s318 = scalar_select %p317, %s316, 13
        %s319 = smul.u32 8, %s318
        %p320 = scmp.lt.s32.totalorder %s28, 0
        %s321 = scalar_select %p320, %s28, 0
        %s322 = scalar_lea.vmem %s4, %s321
        %s323 = smul.u32 13, %s27
        %s324 = ssub.s32 25, %s323
        %p325 = scmp.lt.s32.totalorder %s324, 13
        %s326 = scalar_select %p325, %s324, 13
        %s327 = smul.u32 8, %s326
        %v328 = vld [vmem:[%s274] sm:$0xff]
        %v329 = vld [vmem:[%s274 + $0x8] sm:$0xff]
        %v330 = vld [vmem:[%s274 + $0x10] sm:$0xff]
        %v331 = vld [vmem:[%s274 + $0x18] sm:$0xff]
        %v332 = vld [vmem:[%s274 + $0x20] sm:$0xff]
        %v333 = vld [vmem:[%s274 + $0x28] sm:$0xff]
        %v334 = vld [vmem:[%s274 + $0x30] sm:$0xff]
        %v335 = vld [vmem:[%s274 + $0x38] sm:$0xff]
        %v336 = vld [vmem:[%s274 + $0x40] sm:$0xff]
        %v337 = vld [vmem:[%s274 + $0x48] sm:$0xff]
        %v338 = vld [vmem:[%s274 + $0x50] sm:$0xff]
        %v339 = vld [vmem:[%s274 + $0x58] sm:$0xff]
        %v340 = vld [vmem:[%s274 + $0x60] sm:$0xff]
        %341 = vadd.xlane.f32.xlu0 %v328
        %v342 = vpop.xlane.xlu0 %341
        %343 = vadd.xlane.f32.xlu0 %v329
        %v344 = vpop.xlane.xlu0 %343
        %345 = vadd.xlane.f32.xlu0 %v330
        %v346 = vpop.xlane.xlu0 %345
        %347 = vadd.xlane.f32.xlu0 %v331
        %v348 = vpop.xlane.xlu0 %347
        %349 = vadd.xlane.f32.xlu0 %v332
        %v350 = vpop.xlane.xlu0 %349
        %351 = vadd.xlane.f32.xlu0 %v333
        %v352 = vpop.xlane.xlu0 %351
        %353 = vadd.xlane.f32.xlu0 %v334
        %v354 = vpop.xlane.xlu0 %353
        %355 = vadd.xlane.f32.xlu0 %v335
        %v356 = vpop.xlane.xlu0 %355
        %357 = vadd.xlane.f32.xlu0 %v336
        %v358 = vpop.xlane.xlu0 %357
        %359 = vadd.xlane.f32.xlu0 %v337
        %v360 = vpop.xlane.xlu0 %359
        %361 = vadd.xlane.f32.xlu0 %v338
        %v362 = vpop.xlane.xlu0 %361
        %363 = vadd.xlane.f32.xlu0 %v339
        %v364 = vpop.xlane.xlu0 %363
        %365 = vadd.xlane.f32.xlu0 %v340
        %v366 = vpop.xlane.xlu0 %365
        %v367 = vrcp.pop 128.0
        %v368 = vmul.f32 128.0, %v367
        %v369 = vsub.f32 1.0, %v368
        %v370 = vmul.f32 %v367, %v369
        %v371 = vadd.f32 %v367, %v370
        %vm372 = vweird.f32 %v367
        %v373 = vsel %vm372, %v367, %v371
        %v374 = vmul.f32 %v342, %v373
        %v375 = vmul.f32 %v344, %v373
        %v376 = vmul.f32 %v346, %v373
        %v377 = vmul.f32 %v348, %v373
        %v378 = vmul.f32 %v350, %v373
        %v379 = vmul.f32 %v352, %v373
        %v380 = vmul.f32 %v354, %v373
        %v381 = vmul.f32 %v356, %v373
        %v382 = vmul.f32 %v358, %v373
        %v383 = vmul.f32 %v360, %v373
        %v384 = vmul.f32 %v362, %v373
        %v385 = vmul.f32 %v364, %v373
        %v386 = vmul.f32 %v366, %v373
        %v387 = vsub.f32 %v328, %v374
        %v388 = vsub.f32 %v329, %v375
        %v389 = vsub.f32 %v330, %v376
        %v390 = vsub.f32 %v331, %v377
        %v391 = vsub.f32 %v332, %v378
        %v392 = vsub.f32 %v333, %v379
        %v393 = vsub.f32 %v334, %v380
        %v394 = vsub.f32 %v335, %v381
        %v395 = vsub.f32 %v336, %v382
        %v396 = vsub.f32 %v337, %v383
        %v397 = vsub.f32 %v338, %v384
        %v398 = vsub.f32 %v339, %v385
        %v399 = vsub.f32 %v340, %v386
        %v400 = vmul.f32 %v387, %v387
        %v401 = vmul.f32 %v388, %v388
        %v402 = vmul.f32 %v389, %v389
        %v403 = vmul.f32 %v390, %v390
        %v404 = vmul.f32 %v391, %v391
        %v405 = vmul.f32 %v392, %v392
        %v406 = vmul.f32 %v393, %v393
        %v407 = vmul.f32 %v394, %v394
        %v408 = vmul.f32 %v395, %v395
        %v409 = vmul.f32 %v396, %v396
        %v410 = vmul.f32 %v397, %v397
        %v411 = vmul.f32 %v398, %v398
        %v412 = vmul.f32 %v399, %v399
        %413 = vadd.xlane.f32.xlu0 %v400
        %v414 = vpop.xlane.xlu0 %413
        %415 = vadd.xlane.f32.xlu0 %v401
        %v416 = vpop.xlane.xlu0 %415
        %417 = vadd.xlane.f32.xlu0 %v402
        %v418 = vpop.xlane.xlu0 %417
        %419 = vadd.xlane.f32.xlu0 %v403
        %v420 = vpop.xlane.xlu0 %419
        %421 = vadd.xlane.f32.xlu0 %v404
        %v422 = vpop.xlane.xlu0 %421
        %423 = vadd.xlane.f32.xlu0 %v405
        %v424 = vpop.xlane.xlu0 %423
        %425 = vadd.xlane.f32.xlu0 %v406
        %v426 = vpop.xlane.xlu0 %425
        %427 = vadd.xlane.f32.xlu0 %v407
        %v428 = vpop.xlane.xlu0 %427
        %429 = vadd.xlane.f32.xlu0 %v408
        %v430 = vpop.xlane.xlu0 %429
        %431 = vadd.xlane.f32.xlu0 %v409
        %v432 = vpop.xlane.xlu0 %431
        %433 = vadd.xlane.f32.xlu0 %v410
        %v434 = vpop.xlane.xlu0 %433
        %435 = vadd.xlane.f32.xlu0 %v411
        %v436 = vpop.xlane.xlu0 %435
        %437 = vadd.xlane.f32.xlu0 %v412
        %v438 = vpop.xlane.xlu0 %437
        %v439 = vmul.f32 %v414, %v373
        %v440 = vmul.f32 %v416, %v373
        %v441 = vmul.f32 %v418, %v373
        %v442 = vmul.f32 %v420, %v373
        %v443 = vmul.f32 %v422, %v373
        %v444 = vmul.f32 %v424, %v373
        %v445 = vmul.f32 %v426, %v373
        %v446 = vmul.f32 %v428, %v373
        %v447 = vmul.f32 %v430, %v373
        %v448 = vmul.f32 %v432, %v373
        %v449 = vmul.f32 %v434, %v373
        %v450 = vmul.f32 %v436, %v373
        %v451 = vmul.f32 %v438, %v373
        %v452 = vadd.f32 %v439, 1e-05
        %v453 = vadd.f32 %v440, 1e-05
        %v454 = vadd.f32 %v441, 1e-05
        %v455 = vadd.f32 %v442, 1e-05
        %v456 = vadd.f32 %v443, 1e-05
        %v457 = vadd.f32 %v444, 1e-05
        %v458 = vadd.f32 %v445, 1e-05
        %v459 = vadd.f32 %v446, 1e-05
        %v460 = vadd.f32 %v447, 1e-05
        %v461 = vadd.f32 %v448, 1e-05
        %v462 = vadd.f32 %v449, 1e-05
        %v463 = vadd.f32 %v450, 1e-05
        %v464 = vadd.f32 %v451, 1e-05
        %v465 = vrsqrt.pop %v452
        %v466 = vmul.f32 %v465, %v452
        %v467 = vmul.f32 %v466, %v465
        %v468 = vmul.f32 0.5, %v467
        %v469 = vsub.f32 1.5, %v468
        %v470 = vmul.f32 %v465, %v469
        %vm471 = vweird.f32 %v452
        %vm472 = vweird.f32 %v465
        %vm473 = vmor %vm471, %vm472
        %v474 = vsel %vm473, %v465, %v470
        %v475 = vrsqrt.pop %v453
        %v476 = vmul.f32 %v475, %v453
        %v477 = vmul.f32 %v476, %v475
        %v478 = vmul.f32 0.5, %v477
        %v479 = vsub.f32 1.5, %v478
        %v480 = vmul.f32 %v475, %v479
        %vm481 = vweird.f32 %v453
        %vm482 = vweird.f32 %v475
        %vm483 = vmor %vm481, %vm482
        %v484 = vsel %vm483, %v475, %v480
        %v485 = vrsqrt.pop %v454
        %v486 = vmul.f32 %v485, %v454
        %v487 = vmul.f32 %v486, %v485
        %v488 = vmul.f32 0.5, %v487
        %v489 = vsub.f32 1.5, %v488
        %v490 = vmul.f32 %v485, %v489
        %vm491 = vweird.f32 %v454
        %vm492 = vweird.f32 %v485
        %vm493 = vmor %vm491, %vm492
        %v494 = vsel %vm493, %v485, %v490
        %v495 = vrsqrt.pop %v455
        %v496 = vmul.f32 %v495, %v455
        %v497 = vmul.f32 %v496, %v495
        %v498 = vmul.f32 0.5, %v497
        %v499 = vsub.f32 1.5, %v498
        %v500 = vmul.f32 %v495, %v499
        %vm501 = vweird.f32 %v455
        %vm502 = vweird.f32 %v495
        %vm503 = vmor %vm501, %vm502
        %v504 = vsel %vm503, %v495, %v500
        %v505 = vrsqrt.pop %v456
        %v506 = vmul.f32 %v505, %v456
        %v507 = vmul.f32 %v506, %v505
        %v508 = vmul.f32 0.5, %v507
        %v509 = vsub.f32 1.5, %v508
        %v510 = vmul.f32 %v505, %v509
        %vm511 = vweird.f32 %v456
        %vm512 = vweird.f32 %v505
        %vm513 = vmor %vm511, %vm512
        %v514 = vsel %vm513, %v505, %v510
        %v515 = vrsqrt.pop %v457
        %v516 = vmul.f32 %v515, %v457
        %v517 = vmul.f32 %v516, %v515
        %v518 = vmul.f32 0.5, %v517
        %v519 = vsub.f32 1.5, %v518
        %v520 = vmul.f32 %v515, %v519
        %vm521 = vweird.f32 %v457
        %vm522 = vweird.f32 %v515
        %vm523 = vmor %vm521, %vm522
        %v524 = vsel %vm523, %v515, %v520
        %v525 = vrsqrt.pop %v458
        %v526 = vmul.f32 %v525, %v458
        %v527 = vmul.f32 %v526, %v525
        %v528 = vmul.f32 0.5, %v527
        %v529 = vsub.f32 1.5, %v528
        %v530 = vmul.f32 %v525, %v529
        %vm531 = vweird.f32 %v458
        %vm532 = vweird.f32 %v525
        %vm533 = vmor %vm531, %vm532
        %v534 = vsel %vm533, %v525, %v530
        %v535 = vrsqrt.pop %v459
        %v536 = vmul.f32 %v535, %v459
        %v537 = vmul.f32 %v536, %v535
        %v538 = vmul.f32 0.5, %v537
        %v539 = vsub.f32 1.5, %v538
        %v540 = vmul.f32 %v535, %v539
        %vm541 = vweird.f32 %v459
        %vm542 = vweird.f32 %v535
        %vm543 = vmor %vm541, %vm542
        %v544 = vsel %vm543, %v535, %v540
        %v545 = vrsqrt.pop %v460
        %v546 = vmul.f32 %v545, %v460
        %v547 = vmul.f32 %v546, %v545
        %v548 = vmul.f32 0.5, %v547
        %v549 = vsub.f32 1.5, %v548
        %v550 = vmul.f32 %v545, %v549
        %vm551 = vweird.f32 %v460
        %vm552 = vweird.f32 %v545
        %vm553 = vmor %vm551, %vm552
        %v554 = vsel %vm553, %v545, %v550
        %v555 = vrsqrt.pop %v461
        %v556 = vmul.f32 %v555, %v461
        %v557 = vmul.f32 %v556, %v555
        %v558 = vmul.f32 0.5, %v557
        %v559 = vsub.f32 1.5, %v558
        %v560 = vmul.f32 %v555, %v559
        %vm561 = vweird.f32 %v461
        %vm562 = vweird.f32 %v555
        %vm563 = vmor %vm561, %vm562
        %v564 = vsel %vm563, %v555, %v560
        %v565 = vrsqrt.pop %v462
        %v566 = vmul.f32 %v565, %v462
        %v567 = vmul.f32 %v566, %v565
        %v568 = vmul.f32 0.5, %v567
        %v569 = vsub.f32 1.5, %v568
        %v570 = vmul.f32 %v565, %v569
        %vm571 = vweird.f32 %v462
        %vm572 = vweird.f32 %v565
        %vm573 = vmor %vm571, %vm572
        %v574 = vsel %vm573, %v565, %v570
        %v575 = vrsqrt.pop %v463
        %v576 = vmul.f32 %v575, %v463
        %v577 = vmul.f32 %v576, %v575
        %v578 = vmul.f32 0.5, %v577
        %v579 = vsub.f32 1.5, %v578
        %v580 = vmul.f32 %v575, %v579
        %vm581 = vweird.f32 %v463
        %vm582 = vweird.f32 %v575
        %vm583 = vmor %vm581, %vm582
        %v584 = vsel %vm583, %v575, %v580
        %v585 = vrsqrt.pop %v464
        %v586 = vmul.f32 %v585, %v464
        %v587 = vmul.f32 %v586, %v585
        %v588 = vmul.f32 0.5, %v587
        %v589 = vsub.f32 1.5, %v588
        %v590 = vmul.f32 %v585, %v589
        %vm591 = vweird.f32 %v464
        %vm592 = vweird.f32 %v585
        %vm593 = vmor %vm591, %vm592
        %v594 = vsel %vm593, %v585, %v590
        %v595 = vmul.f32 %v387, %v474
        %v596 = vmul.f32 %v388, %v484
        %v597 = vmul.f32 %v389, %v494
        %v598 = vmul.f32 %v390, %v504
        %v599 = vmul.f32 %v391, %v514
        %v600 = vmul.f32 %v392, %v524
        %v601 = vmul.f32 %v393, %v534
        %v602 = vmul.f32 %v394, %v544
        %v603 = vmul.f32 %v395, %v554
        %v604 = vmul.f32 %v396, %v564
        %v605 = vmul.f32 %v397, %v574
        %v606 = vmul.f32 %v398, %v584
        %v607 = vmul.f32 %v399, %v594
        %v608 = vld [vmem:[#allocation5] sm:$0x1]
        %v610 = vperm.slane %v608, 0
        %v612 = vmul.f32 %v595, %v610
        %v613 = vmul.f32 %v596, %v610
        %v614 = vmul.f32 %v597, %v610
        %v615 = vmul.f32 %v598, %v610
        %v616 = vmul.f32 %v599, %v610
        %v617 = vmul.f32 %v600, %v610
        %v618 = vmul.f32 %v601, %v610
        %v619 = vmul.f32 %v602, %v610
        %v620 = vmul.f32 %v603, %v610
        %v621 = vmul.f32 %v604, %v610
        %v622 = vmul.f32 %v605, %v610
        %v623 = vmul.f32 %v606, %v610
        %v624 = vmul.f32 %v607, %v610
        %v625 = vld [vmem:[%s2] sm:$0x1]
        %v627 = vperm.slane %v625, 0
        %v629 = vadd.f32 %v612, %v627
        %v630 = vadd.f32 %v613, %v627
        %v631 = vadd.f32 %v614, %v627
        %v632 = vadd.f32 %v615, %v627
        %v633 = vadd.f32 %v616, %v627
        %v634 = vadd.f32 %v617, %v627
        %v635 = vadd.f32 %v618, %v627
        %v636 = vadd.f32 %v619, %v627
        %v637 = vadd.f32 %v620, %v627
        %v638 = vadd.f32 %v621, %v627
        %v639 = vadd.f32 %v622, %v627
        %v640 = vadd.f32 %v623, %v627
        %v641 = vadd.f32 %v624, %v627
        %v642 = vld [vmem:[#allocation7] sm:$0xff]
        %v643 = vld [vmem:[#allocation7 + $0x8] sm:$0xff]
        %v644 = vld [vmem:[#allocation7 + $0x10] sm:$0xff]
        %v645 = vld [vmem:[#allocation7 + $0x18] sm:$0xff]
        %v646 = vld [vmem:[#allocation7 + $0x20] sm:$0xff]
        %v647 = vld [vmem:[#allocation7 + $0x28] sm:$0xff]
        %v648 = vld [vmem:[#allocation7 + $0x30] sm:$0xff]
        %v649 = vld [vmem:[#allocation7 + $0x38] sm:$0xff]
        %v650 = vld [vmem:[#allocation7 + $0x40] sm:$0xff]
        %v651 = vld [vmem:[#allocation7 + $0x48] sm:$0xff]
        %v652 = vld [vmem:[#allocation7 + $0x50] sm:$0xff]
        %v653 = vld [vmem:[#allocation7 + $0x58] sm:$0xff]
        %v654 = vld [vmem:[#allocation7 + $0x60] sm:$0xff]
        %v655 = vld [vmem:[#allocation7 + $0x68] sm:$0xff]
        %v656 = vld [vmem:[#allocation7 + $0x70] sm:$0xff]
        %v657 = vld [vmem:[#allocation7 + $0x78] sm:$0xff]
        %v658 = vld [vmem:[%s322] sm:$0x1]
        %v660 = vperm.slane %v658, 0
        %662 = vmatpush.msra.mxu0 %v657
        %663 = vmatpush.msra.mxu0 %v656
        %664 = vmatpush.msra.mxu0 %v655
        %665 = vmatpush.msra.mxu0 %v654
        %666 = vmatpush.msra.mxu0 %v653
        %667 = vmatpush.msra.mxu0 %v652
        %668 = vmatpush.msra.mxu0 %v651
        %669 = vmatpush.msra.mxu0 %v650
        %670 = vmatpush.msra.mxu0 %v649
        %671 = vmatpush.msra.mxu0 %v648
        %672 = vmatpush.msra.mxu0 %v647
        %673 = vmatpush.msra.mxu0 %v646
        %674 = vmatpush.msra.mxu0 %v645
        %675 = vmatpush.msra.mxu0 %v644
        %676 = vmatpush.msra.mxu0 %v643
        %677 = vmatpush.msra.mxu0 %v642
        %678 = vmatmul.f32.gmra.mxu0 %v629
        %v679 = vpop.f32.mrf.mxu0
        %v680 = vadd.f32 %v660, %v679
        %681 = vmatmul.f32.gmra.mxu0 %v630
        %v682 = vpop.f32.mrf.mxu0
        %v683 = vadd.f32 %v660, %v682
        %684 = vmatmul.f32.gmra.mxu0 %v631
        %v685 = vpop.f32.mrf.mxu0
        %v686 = vadd.f32 %v660, %v685
        %687 = vmatmul.f32.gmra.mxu0 %v632
        %v688 = vpop.f32.mrf.mxu0
        %v689 = vadd.f32 %v660, %v688
        %690 = vmatmul.f32.gmra.mxu0 %v633
        %v691 = vpop.f32.mrf.mxu0
        %v692 = vadd.f32 %v660, %v691
        %693 = vmatmul.f32.gmra.mxu0 %v634
        %v694 = vpop.f32.mrf.mxu0
        %v695 = vadd.f32 %v660, %v694
        %696 = vmatmul.f32.gmra.mxu0 %v635
        %v697 = vpop.f32.mrf.mxu0
        %v698 = vadd.f32 %v660, %v697
        %699 = vmatmul.f32.gmra.mxu0 %v636
        %v700 = vpop.f32.mrf.mxu0
        %v701 = vadd.f32 %v660, %v700
        %702 = vmatmul.f32.gmra.mxu0 %v637
        %v703 = vpop.f32.mrf.mxu0
        %v704 = vadd.f32 %v660, %v703
        %705 = vmatmul.f32.gmra.mxu0 %v638
        %v706 = vpop.f32.mrf.mxu0
        %v707 = vadd.f32 %v660, %v706
        %708 = vmatmul.f32.gmra.mxu0 %v639
        %v709 = vpop.f32.mrf.mxu0
        %v710 = vadd.f32 %v660, %v709
        %711 = vmatmul.f32.gmra.mxu0 %v640
        %v712 = vpop.f32.mrf.mxu0
        %v713 = vadd.f32 %v660, %v712
        %714 = vmatmul.f32.gmra.mxu0 %v641
        %v715 = vpop.f32.mrf.mxu0
        %v716 = vadd.f32 %v660, %v715
        %717 = vdwg.mxu0
        %718 = vst [vmem:[%s314] sm:$0xff] %v680
        %719 = vst [vmem:[%s314 + $0x8] sm:$0xff] %v683
        %720 = vst [vmem:[%s314 + $0x10] sm:$0xff] %v686
        %721 = vst [vmem:[%s314 + $0x18] sm:$0xff] %v689
        %722 = vst [vmem:[%s314 + $0x20] sm:$0xff] %v692
        %723 = vst [vmem:[%s314 + $0x28] sm:$0xff] %v695
        %724 = vst [vmem:[%s314 + $0x30] sm:$0xff] %v698
        %725 = vst [vmem:[%s314 + $0x38] sm:$0xff] %v701
        %726 = vst [vmem:[%s314 + $0x40] sm:$0xff] %v704
        %727 = vst [vmem:[%s314 + $0x48] sm:$0xff] %v707
        %728 = vst [vmem:[%s314 + $0x50] sm:$0xff] %v710
        %729 = vst [vmem:[%s314 + $0x58] sm:$0xff] %v713
        %730 = vst [vmem:[%s314 + $0x60] sm:$0xff] %v716
        %s731 = sand.u32 %s165, 1
        %s732 = scalar_lea.sflag [#allocation4], %s731
        %s733 = sand.u32 %s165, 1
        %s734 = smul.addr %s733, 104
        %s735 = scalar_lea.vmem [#allocation8], %s734
        // Predicated region
        $region53: #{tpu_custom_call.1} parent=39 // pred_check
          %p736 = pneg %p175
        $region54: #{tpu_custom_call.1} parent=39 // pred_check_branch
          %738 = sbr.rel (%p736) target = $region56
        $region55: #{tpu_custom_call.1} parent=39 // pred_region
          %s739 = smul.u32 13, %s27
          %s740 = ssub.s32 25, %s739
          %p741 = scmp.lt.s32.totalorder %s740, 13
          %s742 = scalar_select %p741, %s740, 13
          %s743 = smul.u32 8, %s742
          %s744 = ssub.s32 104, %s743
          %s745 = sshll.u32 %s744, 4
          %746 = vsyncadd %s732, %s745
          %p747 = scmp.ne.s32.totalorder 0, %s743
          %s748 = sadd.s32 %s28, %s739
          %s749 = smul.addr %s748, 8
          %s750 = scalar_lea.hbm %s5, %s749
          %s751 = smul.u32 8, %s742
          %s752 = sshll.u32 %s735, 4
          %s753 = int_to_ptr.vmem [resolvable:$true] %s752
          %s754 = sshll.u32 %s750, 4
          %s755 = int_to_ptr.hbm [resolvable:$true] %s754
          %s756 = sshll.u32 %s751, 4
          %760 = dma.vmem_to_hbm [thread:$0]  (%p747), %s753, %s756, %s755, %s732, 128, 128, 8
        $region56: #{tpu_custom_call.1} parent=39 // pred_fallthru
          _
      $region40: #{tpu_custom_call.1} parent=5 // pred_fallthru
        _
      %p761 = scmp.le.s32.totalorder 2, %s18
      // Predicated region
      $region57: #{tpu_custom_call.1} parent=5 // pred_check
        %p762 = pneg %p761
      $region58: #{tpu_custom_call.1} parent=5 // pred_check_branch
        %764 = sbr.rel (%p762) target = $region60
      $region59: #{tpu_custom_call.1} parent=5 // pred_region
        %s765 = ssub.s32 %s18, 2
        // Predicated region
        $region61: #{tpu_custom_call.1} parent=59 // pred_check
          %p766 = pneg %p181
        $region62: #{tpu_custom_call.1} parent=59 // pred_check_branch
          %768 = sbr.rel (%p766) target = $region64
        $region63: #{tpu_custom_call.1} parent=59 // pred_region
          %s769 = sand.u32 %s166, 1
          %s770 = scalar_lea.sflag [#allocation4], %s769
          %s771 = sand.u32 %s166, 1
          %s772 = smul.addr %s771, 104
          %s773 = scalar_lea.vmem [#allocation8], %s772
          %775 = dma.done %s770, 1664
        $region64: #{tpu_custom_call.1} parent=59 // pred_fallthru
          _
      $region60: #{tpu_custom_call.1} parent=5 // pred_fallthru
        _
    $region6: #{tpu_custom_call.1} parent=1 // loop_footer
      %s22 = sadd.s32 1, %s18
    $region7: #{tpu_custom_call.1} parent=1 // loop_footer_branch
      %17 = sbr.rel target = $region3
    $region8: #{tpu_custom_call.1} parent=1 // loop_exit
      _
    %776 = vsyncpa [#allocation3], 1
    %s777 = scalar_lea.sflag [#allocation3], 1
    %778 = vsyncpa %s777, 1
    %779 = vsyncpa [#allocation6], 1
    %780 = vsyncpa [#allocation4], 1
    %s781 = scalar_lea.sflag [#allocation4], 1
    %782 = vsyncpa %s781, 1

</llo_original>
